<compile_context>
chip_gen: v5e
topology: v5e:2x2
jax: 0.10.0
libtpu: 0.0.40
codegen_flags: <defaults>
</compile_context>

<pallas_src>
import jax
import jax.numpy as jnp
from jax.experimental import pallas as pl
from jax.experimental.pallas import tpu as pltpu

EPS_DEFAULT = 1e-5


def _adain_kernel(x_ref, w_ref, b_ref, o_ref, *, eps):
    # x_ref / o_ref : (1, CT, HW)   one (batch, channel-tile) block
    # w_ref / b_ref : (1, CT, 1)    per-channel adaptive scale / shift
    x = x_ref[0].astype(jnp.float32)                       # (CT, HW)

    # Two-pass biased mean/variance over the spatial (lane) axis.
    mean = jnp.mean(x, axis=1, keepdims=True)              # (CT, 1)
    centered = x - mean
    var = jnp.mean(centered * centered, axis=1, keepdims=True)

    scale = w_ref[0].astype(jnp.float32) * jax.lax.rsqrt(var + eps)  # (CT, 1)
    shift = b_ref[0].astype(jnp.float32)                              # (CT, 1)

    o_ref[0] = (centered * scale + shift).astype(o_ref.dtype)


def _pick_c_tile(C, HW, itemsize, budget_bytes=4 << 20):
    """Largest channel tile that evenly divides C, is sublane-aligned (mult of
    8) or the full C, and keeps one block under ~budget_bytes."""
    if C % 8 != 0:
        return C                        # full-C block (legal: equals array dim)
    if C * HW * itemsize <= budget_bytes:
        return C
    for t in range(C - (C % 8), 7, -8):
        if C % t == 0 and t * HW * itemsize <= budget_bytes:
            return t
    return 8


def adain_forward(x_nchw, weight, bias, eps=EPS_DEFAULT):
    """AdaIN forward.

    x_nchw : (B, C, H, W)
    weight : (B*C,)  adaptive per-(sample, channel) scale (assigned externally)
    bias   : (B*C,)  adaptive per-(sample, channel) shift
    """
    B, C, H, W = x_nchw.shape
    HW = H * W

    x = x_nchw.reshape(B, C, HW)                      # pure reshape, no transpose
    w = weight.reshape(B, C, 1).astype(x.dtype)
    b = bias.reshape(B, C, 1).astype(x.dtype)

    c_tile = _pick_c_tile(C, HW, x.dtype.itemsize)
    grid = (B, C // c_tile)

    kernel = lambda xr, wr, br, orf: _adain_kernel(xr, wr, br, orf, eps=eps)

    out = pl.pallas_call(
        kernel,
        out_shape=jax.ShapeDtypeStruct((B, C, HW), x.dtype),
        grid_spec=pltpu.PrefetchScalarGridSpec(
            num_scalar_prefetch=0,
            grid=grid,
            in_specs=[
                pl.BlockSpec((1, c_tile, HW), lambda bi, ci: (bi, ci, 0)),
                pl.BlockSpec((1, c_tile, 1), lambda bi, ci: (bi, ci, 0)),
                pl.BlockSpec((1, c_tile, 1), lambda bi, ci: (bi, ci, 0)),
            ],
            out_specs=pl.BlockSpec((1, c_tile, HW), lambda bi, ci: (bi, ci, 0)),
        ),
        compiler_params=pltpu.CompilerParams(
            dimension_semantics=("parallel", "parallel")),
    )(x, w, b)

    return out.reshape(B, C, H, W)


def adain_reference(x_nchw, weight, bias, eps=EPS_DEFAULT):
    """Pure-JAX reference mirroring F.batch_norm(training=True) on (1,B*C,H,W)."""
    B, C, H, W = x_nchw.shape
    w = weight.reshape(B, C, 1, 1)
    b = bias.reshape(B, C, 1, 1)
    mean = jnp.mean(x_nchw, axis=(2, 3), keepdims=True)
    var = jnp.mean((x_nchw - mean) ** 2, axis=(2, 3), keepdims=True)  # biased
    return w * (x_nchw - mean) / jnp.sqrt(var + eps) + b


if __name__ == "__main__":
    B, C, H, W = 2, 4, 16, 16                         # num_features = 4
    key = jax.random.PRNGKey(0)
    kx, kw, kb = jax.random.split(key, 3)

    x = jax.random.normal(kx, (B, C, H, W), dtype=jnp.float32)
    # AdaIN weight/bias are assigned externally with shape (B*C,) (e.g. from an
    # MLP in MUNIT-style models).
    weight = 1.0 + 0.1 * jax.random.normal(kw, (B * C,), dtype=jnp.float32)
    bias = 0.1 * jax.random.normal(kb, (B * C,), dtype=jnp.float32)

    out = jax.block_until_ready(adain_forward(x, weight, bias))
    ref = jax.block_until_ready(adain_reference(x, weight, bias))

    assert out.shape == (B, C, H, W)
    assert jnp.allclose(out, ref, atol=1e-4, rtol=1e-4), (
        float(jnp.max(jnp.abs(out - ref))))

    print("KERNEL_OK")
</pallas_src>

<mosaic_0001>
module attributes {stable_mosaic.version = 11 : i64} {
  func.func @_lambda_(%arg0: i32, %arg1: i32, %arg2: memref<1x4x256xf32, #tpu.memory_space<vmem>>, %arg3: memref<1x4x1xf32, #tpu.memory_space<vmem>>, %arg4: memref<1x4x1xf32, #tpu.memory_space<vmem>>, %arg5: memref<1x4x256xf32, #tpu.memory_space<vmem>>) attributes {dimension_semantics = [#tpu.dimension_semantics<parallel>, #tpu.dimension_semantics<parallel>], iteration_bounds = array<i64: 2, 1>, scalar_prefetch = 0 : i64, scratch_operands = 0 : i64, tpu.core_type = #tpu.core_type<tc>, window_params = [{transform_indices = @transform_0, window_bounds = array<i64: 1, 4, 256>}, {transform_indices = @transform_1, window_bounds = array<i64: 1, 4, 1>}, {transform_indices = @transform_2, window_bounds = array<i64: 1, 4, 1>}, {transform_indices = @transform_3, window_bounds = array<i64: 1, 4, 256>}]} {
    %c0 = arith.constant 0 : index
    %c0_0 = arith.constant 0 : index
    %c0_1 = arith.constant 0 : index
    %0 = vector.load %arg2[%c0, %c0_0, %c0_1] : memref<1x4x256xf32, #tpu.memory_space<vmem>>, vector<1x4x256xf32>
    %1 = vector.shape_cast %0 : vector<1x4x256xf32> to vector<4x256xf32>
    %cst = arith.constant dense<0.000000e+00> : vector<4xf32>
    %2 = vector.multi_reduction <add>, %1, %cst [1] : vector<4x256xf32> to vector<4xf32>
    %3 = vector.shape_cast %2 : vector<4xf32> to vector<4x1xf32>
    %cst_2 = arith.constant 2.560000e+02 : f32
    %4 = vector.broadcast %cst_2 : f32 to vector<4x1xf32>
    %5 = arith.divf %3, %4 : vector<4x1xf32>
    %6 = vector.broadcast %5 : vector<4x1xf32> to vector<4x256xf32>
    %7 = arith.subf %1, %6 : vector<4x256xf32>
    %8 = arith.mulf %7, %7 : vector<4x256xf32>
    %cst_3 = arith.constant dense<0.000000e+00> : vector<4xf32>
    %9 = vector.multi_reduction <add>, %8, %cst_3 [1] : vector<4x256xf32> to vector<4xf32>
    %10 = vector.shape_cast %9 : vector<4xf32> to vector<4x1xf32>
    %cst_4 = arith.constant 2.560000e+02 : f32
    %11 = vector.broadcast %cst_4 : f32 to vector<4x1xf32>
    %12 = arith.divf %10, %11 : vector<4x1xf32>
    %c0_5 = arith.constant 0 : index
    %c0_6 = arith.constant 0 : index
    %c0_7 = arith.constant 0 : index
    %13 = vector.load %arg3[%c0_5, %c0_6, %c0_7] : memref<1x4x1xf32, #tpu.memory_space<vmem>>, vector<1x4x1xf32>
    %14 = vector.shape_cast %13 : vector<1x4x1xf32> to vector<4x1xf32>
    %cst_8 = arith.constant 9.99999974E-6 : f32
    %15 = vector.broadcast %cst_8 : f32 to vector<4x1xf32>
    %16 = arith.addf %12, %15 : vector<4x1xf32>
    %17 = math.rsqrt %16 : vector<4x1xf32>
    %18 = arith.mulf %14, %17 : vector<4x1xf32>
    %c0_9 = arith.constant 0 : index
    %c0_10 = arith.constant 0 : index
    %c0_11 = arith.constant 0 : index
    %19 = vector.load %arg4[%c0_9, %c0_10, %c0_11] : memref<1x4x1xf32, #tpu.memory_space<vmem>>, vector<1x4x1xf32>
    %20 = vector.shape_cast %19 : vector<1x4x1xf32> to vector<4x1xf32>
    %21 = vector.broadcast %18 : vector<4x1xf32> to vector<4x256xf32>
    %22 = arith.mulf %7, %21 : vector<4x256xf32>
    %23 = vector.broadcast %20 : vector<4x1xf32> to vector<4x256xf32>
    %24 = arith.addf %22, %23 : vector<4x256xf32>
    %c0_12 = arith.constant 0 : index
    %c0_13 = arith.constant 0 : index
    %c0_14 = arith.constant 0 : index
    %25 = vector.load %arg5[%c0_12, %c0_13, %c0_14] : memref<1x4x256xf32, #tpu.memory_space<vmem>>, vector<1x4x256xf32>
    %26 = vector.shape_cast %25 : vector<1x4x256xf32> to vector<4x256xf32>
    %27 = vector.shape_cast %24 : vector<4x256xf32> to vector<1x4x256xf32>
    tpu.vector_store %arg5[%c0_12, %c0_13, %c0_14], %27 {strides = array<i32>} : memref<1x4x256xf32, #tpu.memory_space<vmem>>, vector<1x4x256xf32>,
    return
  }
  func.func @transform_0(%arg0: i32, %arg1: i32) -> (i32, i32, i32) {
    %c0_i32 = arith.constant 0 : i32
    %c0_i32_0 = arith.constant 0 : i32
    return %arg0, %arg1, %c0_i32 : i32, i32, i32
  }
  func.func @transform_1(%arg0: i32, %arg1: i32) -> (i32, i32, i32) {
    %c0_i32 = arith.constant 0 : i32
    %c0_i32_0 = arith.constant 0 : i32
    return %arg0, %arg1, %c0_i32 : i32, i32, i32
  }
  func.func @transform_2(%arg0: i32, %arg1: i32) -> (i32, i32, i32) {
    %c0_i32 = arith.constant 0 : i32
    %c0_i32_0 = arith.constant 0 : i32
    return %arg0, %arg1, %c0_i32 : i32, i32, i32
  }
  func.func @transform_3(%arg0: i32, %arg1: i32) -> (i32, i32, i32) {
    %c0_i32 = arith.constant 0 : i32
    %c0_i32_0 = arith.constant 0 : i32
    return %arg0, %arg1, %c0_i32 : i32, i32, i32
  }
}

</mosaic_0001>

<llo_original>
// kernel: tpu_custom_call.1
$region0: #{tpu_custom_call.1}
  #allocation0 [shape = 'u32[]', space=smem, size = 0x4, offset = 0x4, fixed_abs, tag = 'smem constant byte address 0x4 - core index']
  #allocation1 [shape = 'u32[72,128]{1,0:T(1,128)}', space=vmem, size = 0x9000, scoped, tag = 'internal scratch']
  %s0 = inlined_call_operand.vmem [shape: f32[2,4,256], index: 0, kind: input, shape index: {}]
  %s1 = inlined_call_operand.vmem [shape: f32[2,4,1], index: 1, kind: input, shape index: {}]
  %s2 = inlined_call_operand.vmem [shape: f32[2,4,1], index: 2, kind: input, shape index: {}]
  %s3 = inlined_call_operand.hbm [shape: f32[2,4,256], index: 3, kind: output, shape index: {}]
  %s4 = sld [smem:[#allocation0]]
  $region45: #{tpu_custom_call.1} parent=0
    _
  %s6 = ssub.s32 1, %s4
  %s7 = scalar_select 0, %s6, %s4
  $region1: #{tpu_custom_call.1} parent=0
    #allocation2 [shape = 'u8[8192]{0}', space=vmem, size = 0x2000, scoped, tag = 'output window, operand 0']
    #allocation3 [shape = 's32[2]{0}', space=sflag, size = 0x8, scoped, tag = 'scoped memory for tpu_custom_call.1']
    %8 = vsyncpa [#allocation3], 0
    %s9 = scalar_lea.sflag [#allocation3], 1
    %10 = vsyncpa %s9, 0
    loop: start=0, step=1, limit=4
    $region2: #{tpu_custom_call.1} parent=1 // loop_pre_header
      _
    $region3: #{tpu_custom_call.1} parent=1 // loop_header
      %s12 = sphi 0, %s16
      %p13 = scmp.ge.s32.totalorder %s12, 4
      %s19 = sphi 0, %s31
      %s20 = sphi 0, %s27
      %s21 = sphi 0, %s19
      %s22 = sphi 0, %s20
      %s23 = sphi 0, %s21
      %s24 = sphi 0, %s22
      %s36 = sphi 0, %s38
      %s39 = sphi 0, %s36
      %s40 = sphi 0, %s39
      %s56 = sphi 0, %s40
      %s64 = sphi 0, %s66
      %s67 = sphi 0, %s64
      %s68 = sphi 0, %s67
      %s84 = sphi 0, %s68
      %s92 = sphi 0, %s94
      %s95 = sphi 0, %s92
      %s96 = sphi 0, %s95
      %s112 = sphi 0, %s96
      %s120 = sphi 0, %s122
      %s123 = sphi 0, %s120
      %s124 = sphi 0, %s123
      %s140 = sphi 0, %s124
    $region4: #{tpu_custom_call.1} parent=1 // loop_header_branch
      %15 = sbr.rel (%p13) target = $region8
    $region5: #{tpu_custom_call.1} parent=1 // loop_body
      %s17 = ssub.s32 %s12, 1
      %s18 = ssub.s32 %s12, 2
      %s25 = sadd.s32 1, %s20
      %p26 = scmp.ge.s32.totalorder %s25, 1
      %s27 = scalar_select %p26, 0, %s25
      %s28 = sadd.s32 1, %s19
      %s29 = scalar_select %p26, %s28, %s19
      %p30 = scmp.ge.s32.totalorder %s29, 2
      %s31 = scalar_select %p30, 0, %s29
      %s32 = ssub.s32 %s19, %s31
      %s33 = ssub.s32 %s20, %s27
      %s34 = sor.u32 %s32, %s33
      %p35 = scmp.eq.s32.totalorder %s34, 0
      %s37 = sadd.s32 %s36, 1
      %s38 = scalar_select %p35, %s36, %s37
      %p41 = pneg %p35
      %p42 = scmp.eq.s32.totalorder %s12, 1
      %p43 = por %p41, %p42
      %p44 = scmp.ne.s32.totalorder %s36, %s39
      %p45 = scmp.eq.s32.totalorder %s12, 0
      %p46 = por %p44, %p45
      %p47 = scmp.ne.s32.totalorder %s36, %s39
      %p48 = scmp.eq.s32.totalorder %s17, 1
      %p49 = por %p47, %p48
      %p50 = scmp.ne.s32.totalorder %s39, %s40
      %p51 = scmp.eq.s32.totalorder %s17, 0
      %p52 = por %p50, %p51
      %p53 = scmp.ne.s32.totalorder %s39, %s40
      %p54 = scmp.eq.s32.totalorder %s18, 1
      %p55 = por %p53, %p54
      %p57 = scmp.ne.s32.totalorder %s40, %s56
      %p58 = scmp.eq.s32.totalorder %s18, 0
      %p59 = por %p57, %p58
      %s60 = ssub.s32 %s19, %s31
      %s61 = ssub.s32 %s20, %s27
      %s62 = sor.u32 %s60, %s61
      %p63 = scmp.eq.s32.totalorder %s62, 0
      %s65 = sadd.s32 %s64, 1
      %s66 = scalar_select %p63, %s64, %s65
      %p69 = pneg %p63
      %p70 = scmp.eq.s32.totalorder %s12, 1
      %p71 = por %p69, %p70
      %p72 = scmp.ne.s32.totalorder %s64, %s67
      %p73 = scmp.eq.s32.totalorder %s12, 0
      %p74 = por %p72, %p73
      %p75 = scmp.ne.s32.totalorder %s64, %s67
      %p76 = scmp.eq.s32.totalorder %s17, 1
      %p77 = por %p75, %p76
      %p78 = scmp.ne.s32.totalorder %s67, %s68
      %p79 = scmp.eq.s32.totalorder %s17, 0
      %p80 = por %p78, %p79
      %p81 = scmp.ne.s32.totalorder %s67, %s68
      %p82 = scmp.eq.s32.totalorder %s18, 1
      %p83 = por %p81, %p82
      %p85 = scmp.ne.s32.totalorder %s68, %s84
      %p86 = scmp.eq.s32.totalorder %s18, 0
      %p87 = por %p85, %p86
      %s88 = ssub.s32 %s19, %s31
      %s89 = ssub.s32 %s20, %s27
      %s90 = sor.u32 %s88, %s89
      %p91 = scmp.eq.s32.totalorder %s90, 0
      %s93 = sadd.s32 %s92, 1
      %s94 = scalar_select %p91, %s92, %s93
      %p97 = pneg %p91
      %p98 = scmp.eq.s32.totalorder %s12, 1
      %p99 = por %p97, %p98
      %p100 = scmp.ne.s32.totalorder %s92, %s95
      %p101 = scmp.eq.s32.totalorder %s12, 0
      %p102 = por %p100, %p101
      %p103 = scmp.ne.s32.totalorder %s92, %s95
      %p104 = scmp.eq.s32.totalorder %s17, 1
      %p105 = por %p103, %p104
      %p106 = scmp.ne.s32.totalorder %s95, %s96
      %p107 = scmp.eq.s32.totalorder %s17, 0
      %p108 = por %p106, %p107
      %p109 = scmp.ne.s32.totalorder %s95, %s96
      %p110 = scmp.eq.s32.totalorder %s18, 1
      %p111 = por %p109, %p110
      %p113 = scmp.ne.s32.totalorder %s96, %s112
      %p114 = scmp.eq.s32.totalorder %s18, 0
      %p115 = por %p113, %p114
      %s116 = ssub.s32 %s19, %s31
      %s117 = ssub.s32 %s20, %s27
      %s118 = sor.u32 %s116, %s117
      %p119 = scmp.eq.s32.totalorder %s118, 0
      %s121 = sadd.s32 %s120, 1
      %s122 = scalar_select %p119, %s120, %s121
      %p125 = pneg %p119
      %p126 = scmp.eq.s32.totalorder %s12, 1
      %p127 = por %p125, %p126
      %p128 = scmp.ne.s32.totalorder %s120, %s123
      %p129 = scmp.eq.s32.totalorder %s12, 0
      %p130 = por %p128, %p129
      %p131 = scmp.ne.s32.totalorder %s120, %s123
      %p132 = scmp.eq.s32.totalorder %s17, 1
      %p133 = por %p131, %p132
      %p134 = scmp.ne.s32.totalorder %s123, %s124
      %p135 = scmp.eq.s32.totalorder %s17, 0
      %p136 = por %p134, %p135
      %p137 = scmp.ne.s32.totalorder %s123, %s124
      %p138 = scmp.eq.s32.totalorder %s18, 1
      %p139 = por %p137, %p138
      %p141 = scmp.ne.s32.totalorder %s124, %s140
      %p142 = scmp.eq.s32.totalorder %s18, 0
      %p143 = por %p141, %p142
      %p144 = scmp.le.s32.totalorder 1, %s12
      %p145 = scmp.lt.s32.totalorder %s12, 3
      %p146 = pnand %p144, %p145
      %p147 = pneg %p146
      // Predicated region
      $region9: #{tpu_custom_call.1} parent=5 // pred_check
        _
      $region10: #{tpu_custom_call.1} parent=5 // pred_check_branch
        %149 = sbr.rel (%p146) target = $region12
      $region11: #{tpu_custom_call.1} parent=5 // pred_region
        %s150 = ssub.s32 %s12, 1
      $region12: #{tpu_custom_call.1} parent=5 // pred_fallthru
        _
      %p151 = scmp.lt.s32.totalorder %s12, 2
      // Predicated region
      $region13: #{tpu_custom_call.1} parent=5 // pred_check
        %p152 = pneg %p151
      $region14: #{tpu_custom_call.1} parent=5 // pred_check_branch
        %154 = sbr.rel (%p152) target = $region16
      $region15: #{tpu_custom_call.1} parent=5 // pred_region
        // Predicated region
        $region17: #{tpu_custom_call.1} parent=15 // pred_check
          %p155 = pneg %p46
        $region18: #{tpu_custom_call.1} parent=15 // pred_check_branch
          %157 = sbr.rel (%p155) target = $region20
        $region19: #{tpu_custom_call.1} parent=15 // pred_region
          %p158 = scmp.lt.s32.totalorder %s19, 1
          %s159 = scalar_select %p158, %s19, 1
          %p160 = scmp.lt.s32.totalorder %s20, 0
          %s161 = scalar_select %p160, %s20, 0
          %s162 = smul.addr %s161, 2
          %s163 = smul.addr %s159, 2
          %s164 = sadd.s32 %s162, %s163
          %s165 = smul.addr %s164, 4
          %s166 = scalar_lea.vmem %s0, %s165
        $region20: #{tpu_custom_call.1} parent=15 // pred_fallthru
          _
        // Predicated region
        $region21: #{tpu_custom_call.1} parent=15 // pred_check
          %p167 = pneg %p74
        $region22: #{tpu_custom_call.1} parent=15 // pred_check_branch
          %169 = sbr.rel (%p167) target = $region24
        $region23: #{tpu_custom_call.1} parent=15 // pred_region
          %p170 = scmp.lt.s32.totalorder %s19, 1
          %s171 = scalar_select %p170, %s19, 1
          %p172 = scmp.lt.s32.totalorder %s20, 0
          %s173 = scalar_select %p172, %s20, 0
          %s174 = sadd.s32 %s173, %s171
          %s175 = smul.addr %s174, 4
          %s176 = scalar_lea.vmem %s1, %s175
        $region24: #{tpu_custom_call.1} parent=15 // pred_fallthru
          _
        // Predicated region
        $region25: #{tpu_custom_call.1} parent=15 // pred_check
          %p177 = pneg %p102
        $region26: #{tpu_custom_call.1} parent=15 // pred_check_branch
          %179 = sbr.rel (%p177) target = $region28
        $region27: #{tpu_custom_call.1} parent=15 // pred_region
          %p180 = scmp.lt.s32.totalorder %s19, 1
          %s181 = scalar_select %p180, %s19, 1
          %p182 = scmp.lt.s32.totalorder %s20, 0
          %s183 = scalar_select %p182, %s20, 0
          %s184 = sadd.s32 %s183, %s181
          %s185 = smul.addr %s184, 4
          %s186 = scalar_lea.vmem %s2, %s185
        $region28: #{tpu_custom_call.1} parent=15 // pred_fallthru
          _
      $region16: #{tpu_custom_call.1} parent=5 // pred_fallthru
        _
      %p187 = scmp.le.s32.totalorder 1, %s12
      %p188 = scmp.lt.s32.totalorder %s12, 3
      %p189 = pnand %p187, %p188
      %p190 = pneg %p189
      // Predicated region
      $region29: #{tpu_custom_call.1} parent=5 // pred_check
        _
      $region30: #{tpu_custom_call.1} parent=5 // pred_check_branch
        %192 = sbr.rel (%p189) target = $region32
      $region31: #{tpu_custom_call.1} parent=5 // pred_region
        %s193 = ssub.s32 %s12, 1
        %p194 = scmp.lt.s32.totalorder %s21, 1
        %s195 = scalar_select %p194, %s21, 1
        %p196 = scmp.lt.s32.totalorder %s22, 0
        %s197 = scalar_select %p196, %s22, 0
        %s198 = smul.addr %s197, 2
        %s199 = smul.addr %s195, 2
        %s200 = sadd.s32 %s198, %s199
        %s201 = smul.addr %s200, 4
        %s202 = scalar_lea.vmem %s0, %s201
        %p203 = pneg %p52
        %p204 = pneg %p49
        %p205 = scmp.lt.s32.totalorder %s21, 1
        %s206 = scalar_select %p205, %s21, 1
        %p207 = scmp.lt.s32.totalorder %s22, 0
        %s208 = scalar_select %p207, %s22, 0
        %s209 = sadd.s32 %s208, %s206
        %s210 = smul.addr %s209, 4
        %s211 = scalar_lea.vmem %s1, %s210
        %p212 = pneg %p80
        %p213 = pneg %p77
        %p214 = scmp.lt.s32.totalorder %s21, 1
        %s215 = scalar_select %p214, %s21, 1
        %p216 = scmp.lt.s32.totalorder %s22, 0
        %s217 = scalar_select %p216, %s22, 0
        %s218 = sadd.s32 %s217, %s215
        %s219 = smul.addr %s218, 4
        %s220 = scalar_lea.vmem %s2, %s219
        %p221 = pneg %p108
        %p222 = pneg %p105
        %p223 = pneg %p136
        %p224 = pneg %p133
        %s225 = sand.u32 %s123, 1
        %s226 = scalar_lea.sflag [#allocation3], %s225
        %s227 = sand.u32 %s123, 1
        %s228 = smul.addr %s227, 8
        %s229 = scalar_lea.vmem [#allocation2], %s228
        %p230 = scmp.lt.s32.totalorder %s21, 1
        %s231 = scalar_select %p230, %s21, 1
        %p232 = scmp.lt.s32.totalorder %s22, 0
        %s233 = scalar_select %p232, %s22, 0
        %s234 = smul.addr %s233, 2
        %s235 = smul.addr %s231, 2
        %s236 = sadd.s32 %s234, %s235
        %s237 = smul.addr %s236, 4
        %s238 = scalar_lea.vmem %s0, %s237
        %p239 = scmp.lt.s32.totalorder %s21, 1
        %s240 = scalar_select %p239, %s21, 1
        %p241 = scmp.lt.s32.totalorder %s22, 0
        %s242 = scalar_select %p241, %s22, 0
        %s243 = sadd.s32 %s242, %s240
        %s244 = smul.addr %s243, 4
        %s245 = scalar_lea.vmem %s1, %s244
        %p246 = scmp.lt.s32.totalorder %s21, 1
        %s247 = scalar_select %p246, %s21, 1
        %p248 = scmp.lt.s32.totalorder %s22, 0
        %s249 = scalar_select %p248, %s22, 0
        %s250 = sadd.s32 %s249, %s247
        %s251 = smul.addr %s250, 4
        %s252 = scalar_lea.vmem %s2, %s251
        %v253 = vld [vmem:[%s238] sm:$0xff]
        %255 = vst [vmem:[#allocation1] ss:$2 sm:$0xff] %v253
        %v256 = vld.sshfl [vmem:[#allocation1] sm:$0xff pattern:$0x75316420]
        %v257 = vld.sshfl [vmem:[#allocation1 + $0x8] sm:$0xff pattern:$0x75316420]
        %vm260 = vcmask 1043456
        %v261 = vsel %vm260, %v256, 0.0
        %v262 = vsel %vm260, %v257, 0.0
        %v263 = vadd.f32 %v261, %v262
        %264 = vadd.xlane.f32.xlu0 %v263
        %v265 = vpop.xlane.xlu0 %264
        %v266 = vrcp.pop 256.0
        %v267 = vmul.f32 256.0, %v266
        %v268 = vsub.f32 1.0, %v267
        %v269 = vmul.f32 %v266, %v268
        %v270 = vadd.f32 %v266, %v269
        %vm271 = vweird.f32 %v266
        %v272 = vsel %vm271, %v266, %v270
        %v273 = vmul.f32 %v265, %v272
        %v276 = vunpack.c.l.s4 839922192
        %v277 = vunpack.c.0.s8 %v276
        %v278 = vperm.slane %v273, %v277
        %v280 = vsub.f32 %v253, %v278
        %v281 = vmul.f32 %v280, %v280
        %283 = vst [vmem:[#allocation1] ss:$2 sm:$0xff] %v281
        %v284 = vld.sshfl [vmem:[#allocation1] sm:$0xff pattern:$0x75316420]
        %v285 = vld.sshfl [vmem:[#allocation1 + $0x8] sm:$0xff pattern:$0x75316420]
        %v288 = vsel %vm260, %v284, 0.0
        %v289 = vsel %vm260, %v285, 0.0
        %v290 = vadd.f32 %v288, %v289
        %291 = vadd.xlane.f32.xlu0 %v290
        %v292 = vpop.xlane.xlu0 %291
        %v293 = vmul.f32 %v292, %v272
        %v294 = vld [vmem:[%s245] sm:$0xf]
        %v295 = vadd.f32 %v293, 1e-05
        %v296 = vrsqrt.pop %v295
        %v297 = vmul.f32 %v296, %v295
        %v298 = vmul.f32 %v297, %v296
        %v299 = vmul.f32 0.5, %v298
        %v300 = vsub.f32 1.5, %v299
        %v301 = vmul.f32 %v296, %v300
        %vm302 = vweird.f32 %v295
        %vm303 = vweird.f32 %v296
        %vm304 = vmor %vm302, %vm303
        %v305 = vsel %vm304, %v296, %v301
        %v306 = vmul.f32 %v294, %v305
        %v307 = vld [vmem:[%s252] sm:$0xf]
        %309 = vset.pattern.permute.xlu0 0
        %310 = vperm.xlu0 %309, %v306
        %v311 = vpop.permute.xlu0 %310
        %v313 = vunpack.c.l.s4 839922192
        %v314 = vunpack.c.0.s8 %v313
        %v315 = vperm.slane %v311, %v314
        %v317 = vmul.f32 %v280, %v315
        %319 = vset.pattern.permute.xlu0 0
        %320 = vperm.xlu0 %319, %v307
        %v321 = vpop.permute.xlu0 %320
        %v323 = vunpack.c.l.s4 839922192
        %v324 = vunpack.c.0.s8 %v323
        %v325 = vperm.slane %v321, %v324
        %v327 = vadd.f32 %v317, %v325
        %328 = vst [vmem:[%s229] sm:$0xff] %v327
        %s329 = sand.u32 %s123, 1
        %s330 = scalar_lea.sflag [#allocation3], %s329
        %s331 = sand.u32 %s123, 1
        %s332 = smul.addr %s331, 8
        %s333 = scalar_lea.vmem [#allocation2], %s332
        // Predicated region
        $region33: #{tpu_custom_call.1} parent=31 // pred_check
          %p334 = pneg %p133
        $region34: #{tpu_custom_call.1} parent=31 // pred_check_branch
          %336 = sbr.rel (%p334) target = $region36
        $region35: #{tpu_custom_call.1} parent=31 // pred_region
          %338 = vsyncadd %s330, 0
          %s339 = smul.addr %s22, 2
          %s340 = smul.addr %s21, 2
          %s341 = sadd.s32 %s339, %s340
          %s342 = smul.addr %s341, 4
          %s343 = scalar_lea.hbm %s3, %s342
          %s345 = sshll.u32 %s333, 4
          %s346 = int_to_ptr.vmem [resolvable:$true] %s345
          %s347 = sshll.u32 %s343, 4
          %s348 = int_to_ptr.hbm [resolvable:$true] %s347
          %350 = dma.vmem_to_hbm [thread:$0]  %s346, 128, %s348, %s330
        $region36: #{tpu_custom_call.1} parent=31 // pred_fallthru
          _
      $region32: #{tpu_custom_call.1} parent=5 // pred_fallthru
        _
      %p351 = scmp.le.s32.totalorder 2, %s12
      // Predicated region
      $region37: #{tpu_custom_call.1} parent=5 // pred_check
        %p352 = pneg %p351
      $region38: #{tpu_custom_call.1} parent=5 // pred_check_branch
        %354 = sbr.rel (%p352) target = $region40
      $region39: #{tpu_custom_call.1} parent=5 // pred_region
        %s355 = ssub.s32 %s12, 2
        // Predicated region
        $region41: #{tpu_custom_call.1} parent=39 // pred_check
          %p356 = pneg %p139
        $region42: #{tpu_custom_call.1} parent=39 // pred_check_branch
          %358 = sbr.rel (%p356) target = $region44
        $region43: #{tpu_custom_call.1} parent=39 // pred_region
          %s359 = sand.u32 %s124, 1
          %s360 = scalar_lea.sflag [#allocation3], %s359
          %s361 = sand.u32 %s124, 1
          %s362 = smul.addr %s361, 8
          %s363 = scalar_lea.vmem [#allocation2], %s362
          %365 = dma.done %s360, 128
        $region44: #{tpu_custom_call.1} parent=39 // pred_fallthru
          _
      $region40: #{tpu_custom_call.1} parent=5 // pred_fallthru
        _
    $region6: #{tpu_custom_call.1} parent=1 // loop_footer
      %s16 = sadd.s32 1, %s12
    $region7: #{tpu_custom_call.1} parent=1 // loop_footer_branch
      %11 = sbr.rel target = $region3
    $region8: #{tpu_custom_call.1} parent=1 // loop_exit
      _
    %366 = vsyncpa [#allocation3], 1
    %s367 = scalar_lea.sflag [#allocation3], 1
    %368 = vsyncpa %s367, 1

</llo_original>
